<compile_context>
chip_gen: v7x
topology: tpu7x:2x2x1
jax: 0.10.0
libtpu: 0.0.40
codegen_flags: <defaults>
</compile_context>

<pallas_src>
import functools

import jax
import jax.numpy as jnp
from jax.experimental import pallas as pl
from jax.experimental.pallas import tpu as pltpu

LANES = 128
SUBLANES = 8


def _mae_partial_kernel(gen_ref, gt_ref, acc_ref, *, tm, bpc, valid_rows):
    """Accumulate sum(|gen - gt|) for this core's row-block range into (8,128)."""
    step = pl.program_id(1)

    # Reset the resident output/accumulator block at the start of each core's
    # reduction sweep.
    @pl.when(step == 0)
    def _():
        acc_ref[...] = jnp.zeros_like(acc_ref)

    diff = jnp.abs(gen_ref[...].astype(jnp.float32) -
                   gt_ref[...].astype(jnp.float32))

    # Mask rows beyond the slab end (only emitted when the last block is
    # partial, i.e. M % tm != 0) so OOB garbage never contributes.
    if valid_rows % tm != 0:
        block_idx = pl.program_id(0) * bpc + step
        row_ids = block_idx * tm + jax.lax.broadcasted_iota(
            jnp.int32, (tm, LANES), 0)
        diff = jnp.where(row_ids < valid_rows, diff, 0.0)

    # Fold (tm, 128) -> (8, 128): layout-preserving reshape (whole vreg tiles)
    # + leading-axis sum = pure VPU adds, no per-step cross-lane reduction.
    acc_ref[...] += diff.reshape(tm // SUBLANES, SUBLANES, LANES).sum(axis=0)


def flow_loss(gen_flows, gt_flows, *, tile_rows=2048):
    """Pallas equivalent of torch.mean(torch.abs(gen_flows - gt_flows))."""
    assert gen_flows.shape == gt_flows.shape
    n_elems = int(gen_flows.size)

    gen_flat = gen_flows.reshape(-1)
    gt_flat = gt_flows.reshape(-1)

    # Kernel processes the largest prefix divisible by 8*128 (reshape is free,
    # no padding, native dtype). The tiny ragged tail is handled in plain JAX.
    chunk = SUBLANES * LANES
    n_bulk = (n_elems // chunk) * chunk

    if n_bulk == 0:
        # Input smaller than one (8,128) tile: pure-JAX fallback.
        return jnp.sum(jnp.abs(gen_flat.astype(jnp.float32) -
                               gt_flat.astype(jnp.float32))) / n_elems

    gen_s = gen_flat[:n_bulk].reshape(-1, LANES)
    gt_s = gt_flat[:n_bulk].reshape(-1, LANES)
    M = gen_s.shape[0]  # multiple of 8

    # Tile height: big (amortizes ~0.35us/step), multiple of 8, capped at M.
    tm = max(SUBLANES, (min(tile_rows, M) // SUBLANES) * SUBLANES)
    total_blocks = -(-M // tm)

    # Share the row-block range across two "parallel" grid slots when it
    # divides evenly (both TensorCores on v7x; harmless on v5e/v6e).
    n_split = 2 if total_blocks % 2 == 0 else 1
    bpc = total_blocks // n_split

    itembytes = max(jnp.dtype(gen_flows.dtype).itemsize,
                    jnp.dtype(gt_flows.dtype).itemsize)
    block_bytes = tm * LANES * itembytes
    # 2 inputs x 2 pipeline buffers + headroom; well under physical VMEM on
    # all generations (v5e/v6e 128 MiB, v7x 64 MiB).
    vmem_limit = int(min(4 * block_bytes + (8 << 20), 48 << 20))

    kernel = functools.partial(_mae_partial_kernel,
                               tm=tm, bpc=bpc, valid_rows=M)

    partials = pl.pallas_call(
        kernel,
        out_shape=jax.ShapeDtypeStruct((SUBLANES * n_split, LANES), jnp.float32),
        grid_spec=pltpu.PrefetchScalarGridSpec(
            num_scalar_prefetch=0,
            grid=(n_split, bpc),
            in_specs=[
                pl.BlockSpec((tm, LANES), lambda c, i: (c * bpc + i, 0)),
                pl.BlockSpec((tm, LANES), lambda c, i: (c * bpc + i, 0)),
            ],
            out_specs=pl.BlockSpec((SUBLANES, LANES), lambda c, i: (c, 0)),
        ),
        compiler_params=pltpu.CompilerParams(
            dimension_semantics=("parallel", "arbitrary"),
            vmem_limit_bytes=vmem_limit,
        ),
    )(gen_s, gt_s)

    total = jnp.sum(partials)
    if n_bulk < n_elems:
        total = total + jnp.sum(
            jnp.abs(gen_flat[n_bulk:].astype(jnp.float32) -
                    gt_flat[n_bulk:].astype(jnp.float32)))
    return total / n_elems


if __name__ == "__main__":
    key = jax.random.PRNGKey(0)
    k1, k2 = jax.random.split(key)
    # Flow tensors: NCHW (batch=2, channels=4, spatial=16x16)
    gen_flows = jax.random.normal(k1, (2, 4, 16, 16), dtype=jnp.float32)
    gt_flows = jax.random.normal(k2, (2, 4, 16, 16), dtype=jnp.float32)

    loss = flow_loss(gen_flows, gt_flows)
    jax.block_until_ready(loss)

    # Reference check (same semantics as torch.mean(torch.abs(a - b))).
    ref = jnp.mean(jnp.abs(gen_flows - gt_flows))
    assert jnp.allclose(loss, ref, rtol=1e-5, atol=1e-6), (loss, ref)

    print("KERNEL_OK")
</pallas_src>

<mosaic_0001>
module attributes {stable_mosaic.version = 11 : i64} {
  func.func @_mae_partial_kernel(%arg0: i32, %arg1: i32, %arg2: memref<16x128xf32, #tpu.memory_space<vmem>>, %arg3: memref<16x128xf32, #tpu.memory_space<vmem>>, %arg4: memref<8x128xf32, #tpu.memory_space<vmem>>) attributes {dimension_semantics = [#tpu.dimension_semantics<parallel>, #tpu.dimension_semantics<arbitrary>], iteration_bounds = array<i64: 1, 1>, scalar_prefetch = 0 : i64, scratch_operands = 0 : i64, tpu.core_type = #tpu.core_type<tc>, window_params = [{transform_indices = @transform_0, window_bounds = array<i64: 16, 128>}, {transform_indices = @transform_1, window_bounds = array<i64: 16, 128>}, {transform_indices = @transform_2, window_bounds = array<i64: 8, 128>}]} {
    %c0_i32 = arith.constant 0 : i32
    %0 = arith.cmpi eq, %arg1, %c0_i32 : i32
    %1 = arith.extui %0 : i1 to i32
    %c0_i32_0 = arith.constant 0 : i32
    %2 = arith.cmpi ne, %1, %c0_i32_0 : i32
    scf.if %2 {
      %cst_8 = arith.constant 0.000000e+00 : f32
      %12 = vector.broadcast %cst_8 : f32 to vector<8x128xf32>
      %c0_9 = arith.constant 0 : index
      %c0_10 = arith.constant 0 : index
      %13 = vector.load %arg4[%c0_9, %c0_10] : memref<8x128xf32, #tpu.memory_space<vmem>>, vector<8x128xf32>
      tpu.vector_store %arg4[%c0_9, %c0_10], %12 {strides = array<i32>} : memref<8x128xf32, #tpu.memory_space<vmem>>, vector<8x128xf32>,
    } else {
    }
    %c0 = arith.constant 0 : index
    %c0_1 = arith.constant 0 : index
    %3 = vector.load %arg2[%c0, %c0_1] : memref<16x128xf32, #tpu.memory_space<vmem>>, vector<16x128xf32>
    %c0_2 = arith.constant 0 : index
    %c0_3 = arith.constant 0 : index
    %4 = vector.load %arg3[%c0_2, %c0_3] : memref<16x128xf32, #tpu.memory_space<vmem>>, vector<16x128xf32>
    %5 = arith.subf %3, %4 : vector<16x128xf32>
    %6 = math.absf %5 : vector<16x128xf32>
    %c0_4 = arith.constant 0 : index
    %c0_5 = arith.constant 0 : index
    %7 = vector.load %arg4[%c0_4, %c0_5] : memref<8x128xf32, #tpu.memory_space<vmem>>, vector<8x128xf32>
    %8 = vector.shape_cast %6 : vector<16x128xf32> to vector<2x8x128xf32>
    %cst = arith.constant dense<0.000000e+00> : vector<8x128xf32>
    %9 = vector.multi_reduction <add>, %8, %cst [0] : vector<2x8x128xf32> to vector<8x128xf32>
    %10 = arith.addf %7, %9 : vector<8x128xf32>
    %c0_6 = arith.constant 0 : index
    %c0_7 = arith.constant 0 : index
    %11 = vector.load %arg4[%c0_6, %c0_7] : memref<8x128xf32, #tpu.memory_space<vmem>>, vector<8x128xf32>
    tpu.vector_store %arg4[%c0_6, %c0_7], %10 {strides = array<i32>} : memref<8x128xf32, #tpu.memory_space<vmem>>, vector<8x128xf32>,
    return
  }
  func.func @transform_0(%arg0: i32, %arg1: i32) -> (i32, i32) {
    %c1_i32 = arith.constant 1 : i32
    %0 = arith.muli %arg0, %c1_i32 : i32
    %1 = arith.addi %0, %arg1 : i32
    %c0_i32 = arith.constant 0 : i32
    %c0_i32_0 = arith.constant 0 : i32
    return %1, %c0_i32 : i32, i32
  }
  func.func @transform_1(%arg0: i32, %arg1: i32) -> (i32, i32) {
    %c1_i32 = arith.constant 1 : i32
    %0 = arith.muli %arg0, %c1_i32 : i32
    %1 = arith.addi %0, %arg1 : i32
    %c0_i32 = arith.constant 0 : i32
    %c0_i32_0 = arith.constant 0 : i32
    return %1, %c0_i32 : i32, i32
  }
  func.func @transform_2(%arg0: i32, %arg1: i32) -> (i32, i32) {
    %c0_i32 = arith.constant 0 : i32
    %c0_i32_0 = arith.constant 0 : i32
    return %arg0, %c0_i32 : i32, i32
  }
}

</mosaic_0001>

<llo_original>
// kernel: tpu_custom_call.1
$region0: #{tpu_custom_call.1}
  #allocation0 [shape = 'u32[]', space=smem, size = 0x4, offset = 0x4, fixed_abs, tag = 'smem constant byte address 0x4 - core index']
  #allocation1 [shape = 'u32[144,128]{1,0:T(1,128)}', space=vmem, size = 0x12000, scoped, tag = 'internal scratch']
  %s0 = inlined_call_operand.hbm [shape: f32[16,128], index: 0, kind: input, shape index: {}]
  %s1 = inlined_call_operand.hbm [shape: f32[16,128], index: 1, kind: input, shape index: {}]
  %s2 = inlined_call_operand.hbm [shape: f32[8,128], index: 2, kind: output, shape index: {}]
  %s3 = sld [smem:[#allocation0]]
  $region30: #{tpu_custom_call.1} parent=0
    _
  %s5 = ssub.s32 1, %s3
  %s6 = scalar_select 0, %s5, %s3
  $region1: #{tpu_custom_call.1} parent=0
    #allocation2 [shape = 'u8[8192]{0}', space=vmem, size = 0x2000, scoped, tag = 'input window, operand 0, single buffered']
    #allocation3 [shape = 's32[1]{0}', space=sflag, size = 0x4, scoped, tag = 'scoped memory for tpu_custom_call.1']
    #allocation4 [shape = 's32[1]{0}', space=sflag, size = 0x4, scoped, tag = 'scoped memory for tpu_custom_call.1']
    #allocation5 [shape = 'u8[8192]{0}', space=vmem, size = 0x2000, scoped, tag = 'input window, operand 1, single buffered']
    #allocation6 [shape = 's32[1]{0}', space=sflag, size = 0x4, scoped, tag = 'scoped memory for tpu_custom_call.1']
    #allocation7 [shape = 'u8[4096]{0}', space=vmem, size = 0x1000, scoped, tag = 'output window, operand 0, single buffered']
    %7 = vsyncpa [#allocation3], 0
    %8 = vsyncpa [#allocation6], 0
    %9 = vsyncpa [#allocation4], 0
    // Predicated region
    $region2: #{tpu_custom_call.1} parent=1 // pred_check
      _
    $region3: #{tpu_custom_call.1} parent=1 // pred_check_branch
      %11 = sbr.rel (0) target = $region5
    $region4: #{tpu_custom_call.1} parent=1 // pred_region
      %s12 = sadd.s32 0, 0
      %s13 = smul.u32 2, %s12
      %s15 = ssub.s32 256, 256
      %16 = vsyncadd [#allocation3], %s15
      %s17 = smul.addr %s13, 128
      %s18 = scalar_lea.hbm %s0, %s17
      %s19 = sshll.u32 [#allocation2], 4
      %s20 = int_to_ptr.vmem [resolvable:$true] %s19
      %25 = dma.hbm_to_vmem [thread:$0]  %s18, 256, %s20, [#allocation3], 128, 128, 8
    $region5: #{tpu_custom_call.1} parent=1 // pred_fallthru
      _
    // Predicated region
    $region6: #{tpu_custom_call.1} parent=1 // pred_check
      _
    $region7: #{tpu_custom_call.1} parent=1 // pred_check_branch
      %27 = sbr.rel (0) target = $region9
    $region8: #{tpu_custom_call.1} parent=1 // pred_region
      %s28 = sadd.s32 0, 0
      %s29 = smul.u32 2, %s28
      %s31 = ssub.s32 256, 256
      %32 = vsyncadd [#allocation6], %s31
      %s33 = smul.addr %s29, 128
      %s34 = scalar_lea.hbm %s1, %s33
      %s35 = sshll.u32 [#allocation5], 4
      %s36 = int_to_ptr.vmem [resolvable:$true] %s35
      %41 = dma.hbm_to_vmem [thread:$0]  %s34, 256, %s36, [#allocation6], 128, 128, 8
    $region9: #{tpu_custom_call.1} parent=1 // pred_fallthru
      _
    // Predicated region
    $region10: #{tpu_custom_call.1} parent=1 // pred_check
      _
    $region11: #{tpu_custom_call.1} parent=1 // pred_check_branch
      %43 = sbr.rel (0) target = $region13
    $region12: #{tpu_custom_call.1} parent=1 // pred_region
      %44 = dma.done [#allocation3], 256
    $region13: #{tpu_custom_call.1} parent=1 // pred_fallthru
      _
    // Predicated region
    $region14: #{tpu_custom_call.1} parent=1 // pred_check
      _
    $region15: #{tpu_custom_call.1} parent=1 // pred_check_branch
      %46 = sbr.rel (0) target = $region17
    $region16: #{tpu_custom_call.1} parent=1 // pred_region
      %47 = dma.done [#allocation6], 256
    $region17: #{tpu_custom_call.1} parent=1 // pred_fallthru
      _
    %s48 = sadd.s32 0, 0
    %s49 = smul.u32 2, %s48
    %s50 = sadd.s32 0, 0
    %s51 = smul.u32 2, %s50
    %p52 = scmp.eq.s32.totalorder 0, 0
    // Predicated region
    $region18: #{tpu_custom_call.1} parent=1 // pred_check
      %p53 = pneg %p52
    $region19: #{tpu_custom_call.1} parent=1 // pred_check_branch
      %55 = sbr.rel (%p53) target = $region21
    $region20: #{tpu_custom_call.1} parent=1 // pred_region
      %56 = vst [vmem:[#allocation7] sm:$0xff] 0.0
    $region21: #{tpu_custom_call.1} parent=1 // pred_fallthru
      _
    %v57 = vld [vmem:[#allocation2] sm:$0xff]
    %v58 = vld [vmem:[#allocation2 + $0x8] sm:$0xff]
    %v59 = vld [vmem:[#allocation5] sm:$0xff]
    %v60 = vld [vmem:[#allocation5 + $0x8] sm:$0xff]
    %v61 = vsub.f32 %v57, %v59
    %v62 = vsub.f32 %v58, %v60
    %v63 = vand.u32 2147483647, %v61
    %v64 = vand.u32 2147483647, %v62
    %v65 = vld [vmem:[#allocation7] sm:$0xff]
    %v66 = vadd.f32 %v63, %v64
    %v67 = vadd.f32 %v65, %v66
    %68 = vst [vmem:[#allocation7] sm:$0xff] %v67
    // Predicated region
    $region22: #{tpu_custom_call.1} parent=1 // pred_check
      _
    $region23: #{tpu_custom_call.1} parent=1 // pred_check_branch
      %70 = sbr.rel (0) target = $region25
    $region24: #{tpu_custom_call.1} parent=1 // pred_region
      %s72 = ssub.s32 128, 128
      %73 = vsyncadd [#allocation4], %s72
      %s75 = sshll.u32 [#allocation7], 4
      %s76 = int_to_ptr.vmem [resolvable:$true] %s75
      %78 = dma.vmem_to_hbm [thread:$0]  %s76, 128, %s2, [#allocation4]
    $region25: #{tpu_custom_call.1} parent=1 // pred_fallthru
      _
    // Predicated region
    $region26: #{tpu_custom_call.1} parent=1 // pred_check
      _
    $region27: #{tpu_custom_call.1} parent=1 // pred_check_branch
      %80 = sbr.rel (0) target = $region29
    $region28: #{tpu_custom_call.1} parent=1 // pred_region
      %81 = dma.done [#allocation4], 128
    $region29: #{tpu_custom_call.1} parent=1 // pred_fallthru
      _
    %82 = vsyncpa [#allocation3], 1
    %83 = vsyncpa [#allocation6], 1
    %84 = vsyncpa [#allocation4], 1

</llo_original>
